<compile_context>
chip_gen: v7x
topology: tpu7x:2x2x1
jax: 0.10.0
libtpu: 0.0.40
codegen_flags: <defaults>
</compile_context>

<pallas_src>
import functools

import jax
import jax.numpy as jnp
from jax import lax
from jax.experimental import pallas as pl
from jax.experimental.pallas import tpu as pltpu

_EPS = 1e-8              # torch.nn.CosineSimilarity default eps
_SUBLANES = 8
_MAX_TILE_LANES = 8192   # pixels per block = 8 * this; C=4 f32 block = 1 MiB


def _color_loss_kernel(x_ref, y_ref, out_ref, *, c, tile, hw8, needs_mask):
    # x_ref / y_ref: (1, C, 8, tile) in the input dtype.
    # out_ref:       (1, 1, 8, 128) f32 partial-sum block.
    # Unrolled channel reduction: 5 running sums over C (<= 4) channel planes,
    # each plane a fully packed (8, tile) slab -> pure full-width VPU work.
    xy = xx = yy = sx = sy = None
    for k in range(c):
        xk = x_ref[0, k, :, :].astype(jnp.float32)      # (8, tile)
        yk = y_ref[0, k, :, :].astype(jnp.float32)
        if k == 0:
            xy, xx, yy, sx, sy = xk * yk, xk * xk, yk * yk, xk, yk
        else:
            xy += xk * yk
            xx += xk * xk
            yy += yk * yk
            sx += xk
            sy += yk

    cf = jnp.float32(c)
    # Sums for (1 - x), (1 - y) derived algebraically from the same 5 sums:
    #   sum((1-x)(1-y)) = C - sx - sy + xy ;  sum((1-x)^2) = C - 2*sx + xx
    oxy = cf - sx - sy + xy
    oxx = cf - 2.0 * sx + xx
    oyy = cf - 2.0 * sy + yy

    # cos = dot / max(||a||*||b||, eps)  ==  dot * rsqrt(max(aa*bb, eps^2))
    eps2 = jnp.float32(_EPS * _EPS)
    cl = xy * lax.rsqrt(jnp.maximum(xx * yy, eps2))
    cr = oxy * lax.rsqrt(jnp.maximum(oxx * oyy, eps2))

    base = 1.0 - jnp.minimum(cl, cr) + jnp.float32(0.001)   # strictly > 0
    term = jnp.exp(jnp.float32(0.4) * jnp.log(base))        # base ** 0.4

    if needs_mask:
        # Only compiled in when the last pixel tile is ragged (huge images):
        # zero out lanes past the real H*W/8 extent (OOB reads are garbage).
        j = pl.program_id(1)
        lane = lax.broadcasted_iota(jnp.int32, term.shape, 1)
        term = jnp.where(j * tile + lane < hw8, term, 0.0)

    # One cross-lane reduction per (large) block; splat into the lane-dense
    # (8, 128) output block (JAX reads element [0, 0]).
    out_ref[...] = jnp.broadcast_to(jnp.sum(term), (1, 1, _SUBLANES, 128))


def color_loss(x, y):
    """x, y: NCHW arrays (any float dtype). Returns scalar float32 loss."""
    assert x.shape == y.shape
    b, c, h, w = x.shape
    hw = h * w
    n_pixels = b * hw

    # Free view: NCHW is already contiguous as (B, C, H*W). No transpose,
    # no dtype upcast -- the f32 cast happens in-vreg inside the kernel.
    xr = x.reshape(b, c, hw)
    yr = y.reshape(b, c, hw)

    # Pack pixels onto (sublane, lane): (B, C, 8, HW/8). Pad HW to a multiple
    # of 8 only in the rare ragged case; each zero-padded pixel contributes
    # exactly 1.001**0.4, subtracted analytically below (no in-kernel mask).
    pad_hw = (-hw) % _SUBLANES
    if pad_hw:
        xr = jnp.pad(xr, ((0, 0), (0, 0), (0, pad_hw)))
        yr = jnp.pad(yr, ((0, 0), (0, 0), (0, pad_hw)))
    hw_p = hw + pad_hw
    hw8 = hw_p // _SUBLANES
    xr = xr.reshape(b, c, _SUBLANES, hw8)
    yr = yr.reshape(b, c, _SUBLANES, hw8)

    if hw8 <= _MAX_TILE_LANES:
        tile = hw8                      # full last dim (always a legal block)
        grid_hw = 1
        needs_mask = False
    else:
        tile = _MAX_TILE_LANES          # multiple of 128
        grid_hw = pl.cdiv(hw8, tile)
        needs_mask = (hw8 % tile) != 0

    kernel = functools.partial(
        _color_loss_kernel, c=c, tile=tile, hw8=hw8, needs_mask=needs_mask)

    in_bytes = 2 * b * c * hw_p * jnp.dtype(x.dtype).itemsize
    out_bytes = b * grid_hw * _SUBLANES * 128 * 4
    cost = pl.CostEstimate(
        flops=int(b * hw_p * (8 * c + 16)),
        transcendentals=int(4 * b * hw_p),       # 2 rsqrt + log + exp / pixel
        bytes_accessed=int(in_bytes + out_bytes),
    )

    partials = pl.pallas_call(
        kernel,
        out_shape=jax.ShapeDtypeStruct((b, grid_hw, _SUBLANES, 128),
                                       jnp.float32),
        grid=(b, grid_hw),
        in_specs=[
            pl.BlockSpec((1, c, _SUBLANES, tile), lambda i, j: (i, 0, 0, j)),
            pl.BlockSpec((1, c, _SUBLANES, tile), lambda i, j: (i, 0, 0, j)),
        ],
        out_specs=pl.BlockSpec((1, 1, _SUBLANES, 128),
                               lambda i, j: (i, j, 0, 0)),
        compiler_params=pltpu.CompilerParams(
            dimension_semantics=("parallel", "parallel")),
        cost_estimate=cost,
    )(xr, yr)

    total = jnp.sum(partials[:, :, 0, 0])
    if pad_hw:
        pad_term = jnp.exp(jnp.float32(0.4) * jnp.log(jnp.float32(1.001)))
        total = total - jnp.float32(b * pad_hw) * pad_term
    return total / jnp.float32(n_pixels)


def _color_loss_ref(x, y):
    """Pure-JAX reference matching the PyTorch module."""
    o = jnp.transpose(x, (0, 2, 3, 1)).astype(jnp.float32)
    d = jnp.transpose(y, (0, 2, 3, 1)).astype(jnp.float32)

    def cos(a, b):
        num = jnp.sum(a * b, axis=3)
        na = jnp.sqrt(jnp.sum(a * a, axis=3))
        nb = jnp.sqrt(jnp.sum(b * b, axis=3))
        return num / jnp.maximum(na * nb, _EPS)

    cl = cos(o, d)
    cr = cos(1 - o, 1 - d)
    return jnp.mean((1 - jnp.minimum(cl, cr) + 0.001) ** 0.4)


if __name__ == "__main__":
    key = jax.random.PRNGKey(0)
    kx, ky = jax.random.split(key)
    B, C, H, W = 2, 4, 16, 16
    x = jax.random.uniform(kx, (B, C, H, W), dtype=jnp.float32)
    y = jax.random.uniform(ky, (B, C, H, W), dtype=jnp.float32)

    loss = jax.block_until_ready(color_loss(x, y))
    ref = jax.block_until_ready(_color_loss_ref(x, y))

    assert jnp.allclose(loss, ref, atol=1e-5, rtol=1e-5), (loss, ref)
    print("KERNEL_OK")
</pallas_src>

<mosaic_0001>
module attributes {stable_mosaic.version = 11 : i64} {
  func.func @_color_loss_kernel(%arg0: i32, %arg1: i32, %arg2: memref<1x4x8x32xf32, #tpu.memory_space<vmem>>, %arg3: memref<1x4x8x32xf32, #tpu.memory_space<vmem>>, %arg4: memref<1x1x8x128xf32, #tpu.memory_space<vmem>>) attributes {dimension_semantics = [#tpu.dimension_semantics<parallel>, #tpu.dimension_semantics<parallel>], iteration_bounds = array<i64: 2, 1>, scalar_prefetch = 0 : i64, scratch_operands = 0 : i64, tpu.core_type = #tpu.core_type<tc>, window_params = [{transform_indices = @transform_0, window_bounds = array<i64: 1, 4, 8, 32>}, {transform_indices = @transform_1, window_bounds = array<i64: 1, 4, 8, 32>}, {transform_indices = @transform_2, window_bounds = array<i64: 1, 1, 8, 128>}]} {
    %c0 = arith.constant 0 : index
    %c0_0 = arith.constant 0 : index
    %c0_1 = arith.constant 0 : index
    %c0_2 = arith.constant 0 : index
    %0 = vector.load %arg2[%c0, %c0_0, %c0_1, %c0_2] : memref<1x4x8x32xf32, #tpu.memory_space<vmem>>, vector<1x1x8x32xf32>
    %1 = vector.shape_cast %0 : vector<1x1x8x32xf32> to vector<8x32xf32>
    %c0_3 = arith.constant 0 : index
    %c0_4 = arith.constant 0 : index
    %c0_5 = arith.constant 0 : index
    %c0_6 = arith.constant 0 : index
    %2 = vector.load %arg3[%c0_3, %c0_4, %c0_5, %c0_6] : memref<1x4x8x32xf32, #tpu.memory_space<vmem>>, vector<1x1x8x32xf32>
    %3 = vector.shape_cast %2 : vector<1x1x8x32xf32> to vector<8x32xf32>
    %4 = arith.mulf %1, %3 : vector<8x32xf32>
    %5 = arith.mulf %1, %1 : vector<8x32xf32>
    %6 = arith.mulf %3, %3 : vector<8x32xf32>
    %c0_7 = arith.constant 0 : index
    %c1 = arith.constant 1 : index
    %c0_8 = arith.constant 0 : index
    %c0_9 = arith.constant 0 : index
    %7 = vector.load %arg2[%c0_7, %c1, %c0_8, %c0_9] : memref<1x4x8x32xf32, #tpu.memory_space<vmem>>, vector<1x1x8x32xf32>
    %8 = vector.shape_cast %7 : vector<1x1x8x32xf32> to vector<8x32xf32>
    %c0_10 = arith.constant 0 : index
    %c1_11 = arith.constant 1 : index
    %c0_12 = arith.constant 0 : index
    %c0_13 = arith.constant 0 : index
    %9 = vector.load %arg3[%c0_10, %c1_11, %c0_12, %c0_13] : memref<1x4x8x32xf32, #tpu.memory_space<vmem>>, vector<1x1x8x32xf32>
    %10 = vector.shape_cast %9 : vector<1x1x8x32xf32> to vector<8x32xf32>
    %11 = arith.mulf %8, %10 : vector<8x32xf32>
    %12 = arith.addf %4, %11 : vector<8x32xf32>
    %13 = arith.mulf %8, %8 : vector<8x32xf32>
    %14 = arith.addf %5, %13 : vector<8x32xf32>
    %15 = arith.mulf %10, %10 : vector<8x32xf32>
    %16 = arith.addf %6, %15 : vector<8x32xf32>
    %17 = arith.addf %1, %8 : vector<8x32xf32>
    %18 = arith.addf %3, %10 : vector<8x32xf32>
    %c0_14 = arith.constant 0 : index
    %c2 = arith.constant 2 : index
    %c0_15 = arith.constant 0 : index
    %c0_16 = arith.constant 0 : index
    %19 = vector.load %arg2[%c0_14, %c2, %c0_15, %c0_16] : memref<1x4x8x32xf32, #tpu.memory_space<vmem>>, vector<1x1x8x32xf32>
    %20 = vector.shape_cast %19 : vector<1x1x8x32xf32> to vector<8x32xf32>
    %c0_17 = arith.constant 0 : index
    %c2_18 = arith.constant 2 : index
    %c0_19 = arith.constant 0 : index
    %c0_20 = arith.constant 0 : index
    %21 = vector.load %arg3[%c0_17, %c2_18, %c0_19, %c0_20] : memref<1x4x8x32xf32, #tpu.memory_space<vmem>>, vector<1x1x8x32xf32>
    %22 = vector.shape_cast %21 : vector<1x1x8x32xf32> to vector<8x32xf32>
    %23 = arith.mulf %20, %22 : vector<8x32xf32>
    %24 = arith.addf %12, %23 : vector<8x32xf32>
    %25 = arith.mulf %20, %20 : vector<8x32xf32>
    %26 = arith.addf %14, %25 : vector<8x32xf32>
    %27 = arith.mulf %22, %22 : vector<8x32xf32>
    %28 = arith.addf %16, %27 : vector<8x32xf32>
    %29 = arith.addf %17, %20 : vector<8x32xf32>
    %30 = arith.addf %18, %22 : vector<8x32xf32>
    %c0_21 = arith.constant 0 : index
    %c3 = arith.constant 3 : index
    %c0_22 = arith.constant 0 : index
    %c0_23 = arith.constant 0 : index
    %31 = vector.load %arg2[%c0_21, %c3, %c0_22, %c0_23] : memref<1x4x8x32xf32, #tpu.memory_space<vmem>>, vector<1x1x8x32xf32>
    %32 = vector.shape_cast %31 : vector<1x1x8x32xf32> to vector<8x32xf32>
    %c0_24 = arith.constant 0 : index
    %c3_25 = arith.constant 3 : index
    %c0_26 = arith.constant 0 : index
    %c0_27 = arith.constant 0 : index
    %33 = vector.load %arg3[%c0_24, %c3_25, %c0_26, %c0_27] : memref<1x4x8x32xf32, #tpu.memory_space<vmem>>, vector<1x1x8x32xf32>
    %34 = vector.shape_cast %33 : vector<1x1x8x32xf32> to vector<8x32xf32>
    %35 = arith.mulf %32, %34 : vector<8x32xf32>
    %36 = arith.addf %24, %35 : vector<8x32xf32>
    %37 = arith.mulf %32, %32 : vector<8x32xf32>
    %38 = arith.addf %26, %37 : vector<8x32xf32>
    %39 = arith.mulf %34, %34 : vector<8x32xf32>
    %40 = arith.addf %28, %39 : vector<8x32xf32>
    %41 = arith.addf %29, %32 : vector<8x32xf32>
    %42 = arith.addf %30, %34 : vector<8x32xf32>
    %cst = arith.constant 4.000000e+00 : f32
    %43 = vector.broadcast %cst : f32 to vector<8x32xf32>
    %44 = arith.subf %43, %41 : vector<8x32xf32>
    %45 = arith.subf %44, %42 : vector<8x32xf32>
    %46 = arith.addf %45, %36 : vector<8x32xf32>
    %cst_28 = arith.constant 2.000000e+00 : f32
    %47 = vector.broadcast %cst_28 : f32 to vector<8x32xf32>
    %48 = arith.mulf %47, %41 : vector<8x32xf32>
    %cst_29 = arith.constant 4.000000e+00 : f32
    %49 = vector.broadcast %cst_29 : f32 to vector<8x32xf32>
    %50 = arith.subf %49, %48 : vector<8x32xf32>
    %51 = arith.addf %50, %38 : vector<8x32xf32>
    %cst_30 = arith.constant 2.000000e+00 : f32
    %52 = vector.broadcast %cst_30 : f32 to vector<8x32xf32>
    %53 = arith.mulf %52, %42 : vector<8x32xf32>
    %cst_31 = arith.constant 4.000000e+00 : f32
    %54 = vector.broadcast %cst_31 : f32 to vector<8x32xf32>
    %55 = arith.subf %54, %53 : vector<8x32xf32>
    %56 = arith.addf %55, %40 : vector<8x32xf32>
    %57 = arith.mulf %38, %40 : vector<8x32xf32>
    %cst_32 = arith.constant 1.000000e-16 : f32
    %58 = vector.broadcast %cst_32 : f32 to vector<8x32xf32>
    %59 = arith.maximumf %57, %58 : vector<8x32xf32>
    %60 = math.rsqrt %59 : vector<8x32xf32>
    %61 = arith.mulf %36, %60 : vector<8x32xf32>
    %62 = arith.mulf %51, %56 : vector<8x32xf32>
    %cst_33 = arith.constant 1.000000e-16 : f32
    %63 = vector.broadcast %cst_33 : f32 to vector<8x32xf32>
    %64 = arith.maximumf %62, %63 : vector<8x32xf32>
    %65 = math.rsqrt %64 : vector<8x32xf32>
    %66 = arith.mulf %46, %65 : vector<8x32xf32>
    %67 = arith.minimumf %61, %66 : vector<8x32xf32>
    %cst_34 = arith.constant 1.000000e+00 : f32
    %68 = vector.broadcast %cst_34 : f32 to vector<8x32xf32>
    %69 = arith.subf %68, %67 : vector<8x32xf32>
    %cst_35 = arith.constant 1.000000e-03 : f32
    %70 = vector.broadcast %cst_35 : f32 to vector<8x32xf32>
    %71 = arith.addf %69, %70 : vector<8x32xf32>
    %72 = math.log %71 : vector<8x32xf32>
    %cst_36 = arith.constant 4.000000e-01 : f32
    %73 = vector.broadcast %cst_36 : f32 to vector<8x32xf32>
    %74 = arith.mulf %73, %72 : vector<8x32xf32>
    %75 = math.exp %74 : vector<8x32xf32>
    %76 = vector.shape_cast %75 : vector<8x32xf32> to vector<1x8x32xf32>
    %cst_37 = arith.constant dense<0.000000e+00> : vector<1xf32>
    %77 = vector.multi_reduction <add>, %76, %cst_37 [1, 2] : vector<1x8x32xf32> to vector<1xf32>
    %78 = vector.shape_cast %77 : vector<1xf32> to vector<1x1x1xf32>
    %79 = vector.extract %78[0, 0, 0] : f32 from vector<1x1x1xf32>
    %80 = vector.broadcast %79 : f32 to vector<1x1x8x128xf32>
    %c0_38 = arith.constant 0 : index
    %c0_39 = arith.constant 0 : index
    %c0_40 = arith.constant 0 : index
    %c0_41 = arith.constant 0 : index
    %81 = vector.load %arg4[%c0_38, %c0_39, %c0_40, %c0_41] : memref<1x1x8x128xf32, #tpu.memory_space<vmem>>, vector<1x1x8x128xf32>
    tpu.vector_store %arg4[%c0_38, %c0_39, %c0_40, %c0_41], %80 {strides = array<i32>} : memref<1x1x8x128xf32, #tpu.memory_space<vmem>>, vector<1x1x8x128xf32>,
    return
  }
  func.func @transform_0(%arg0: i32, %arg1: i32) -> (i32, i32, i32, i32) {
    %c0_i32 = arith.constant 0 : i32
    %c0_i32_0 = arith.constant 0 : i32
    %c0_i32_1 = arith.constant 0 : i32
    return %arg0, %c0_i32, %c0_i32_0, %arg1 : i32, i32, i32, i32
  }
  func.func @transform_1(%arg0: i32, %arg1: i32) -> (i32, i32, i32, i32) {
    %c0_i32 = arith.constant 0 : i32
    %c0_i32_0 = arith.constant 0 : i32
    %c0_i32_1 = arith.constant 0 : i32
    return %arg0, %c0_i32, %c0_i32_0, %arg1 : i32, i32, i32, i32
  }
  func.func @transform_2(%arg0: i32, %arg1: i32) -> (i32, i32, i32, i32) {
    %c0_i32 = arith.constant 0 : i32
    %c0_i32_0 = arith.constant 0 : i32
    %c0_i32_1 = arith.constant 0 : i32
    return %arg0, %arg1, %c0_i32, %c0_i32_0 : i32, i32, i32, i32
  }
}

</mosaic_0001>

<llo_original>
// kernel: tpu_custom_call.1
$region0: #{tpu_custom_call.1}
  #allocation0 [shape = 'u32[]', space=smem, size = 0x4, offset = 0x4, fixed_abs, tag = 'smem constant byte address 0x4 - core index']
  #allocation1 [shape = 'u32[144,128]{1,0:T(1,128)}', space=vmem, size = 0x12000, scoped, tag = 'internal scratch']
  %s0 = inlined_call_operand.hbm [shape: f32[2,4,8,32], index: 0, kind: input, shape index: {}]
  %s1 = inlined_call_operand.hbm [shape: f32[2,4,8,32], index: 1, kind: input, shape index: {}]
  %s2 = inlined_call_operand.hbm [shape: f32[2,1,8,128], index: 2, kind: output, shape index: {}]
  %s3 = sld [smem:[#allocation0]]
  $region49: #{tpu_custom_call.1} parent=0
    _
  %s5 = ssub.s32 1, %s3
  %s6 = scalar_select 0, %s5, %s3
  $region1: #{tpu_custom_call.1} parent=0
    #allocation2 [shape = 'u8[32768]{0}', space=vmem, size = 0x8000, scoped, tag = 'input window, operand 0']
    #allocation3 [shape = 's32[2]{0}', space=sflag, size = 0x8, scoped, tag = 'scoped memory for tpu_custom_call.1']
    #allocation4 [shape = 's32[2]{0}', space=sflag, size = 0x8, scoped, tag = 'scoped memory for tpu_custom_call.1']
    #allocation5 [shape = 'u8[32768]{0}', space=vmem, size = 0x8000, scoped, tag = 'input window, operand 1']
    #allocation6 [shape = 's32[2]{0}', space=sflag, size = 0x8, scoped, tag = 'scoped memory for tpu_custom_call.1']
    #allocation7 [shape = 'u8[8192]{0}', space=vmem, size = 0x2000, scoped, tag = 'output window, operand 0']
    %7 = vsyncpa [#allocation3], 0
    %s8 = scalar_lea.sflag [#allocation3], 1
    %9 = vsyncpa %s8, 0
    %10 = vsyncpa [#allocation6], 0
    %s11 = scalar_lea.sflag [#allocation6], 1
    %12 = vsyncpa %s11, 0
    %13 = vsyncpa [#allocation4], 0
    %s14 = scalar_lea.sflag [#allocation4], 1
    %15 = vsyncpa %s14, 0
    loop: start=0, step=1, limit=4
    $region2: #{tpu_custom_call.1} parent=1 // loop_pre_header
      _
    $region3: #{tpu_custom_call.1} parent=1 // loop_header
      %s17 = sphi 0, %s21
      %p18 = scmp.ge.s32.totalorder %s17, 4
      %s24 = sphi 0, %s36
      %s25 = sphi 0, %s32
      %s26 = sphi 0, %s24
      %s27 = sphi 0, %s25
      %s28 = sphi 0, %s26
      %s29 = sphi 0, %s27
      %s41 = sphi 0, %s43
      %s44 = sphi 0, %s41
      %s45 = sphi 0, %s44
      %s61 = sphi 0, %s45
      %s69 = sphi 0, %s71
      %s72 = sphi 0, %s69
      %s73 = sphi 0, %s72
      %s89 = sphi 0, %s73
      %s97 = sphi 0, %s99
      %s100 = sphi 0, %s97
      %s101 = sphi 0, %s100
      %s117 = sphi 0, %s101
    $region4: #{tpu_custom_call.1} parent=1 // loop_header_branch
      %20 = sbr.rel (%p18) target = $region8
    $region5: #{tpu_custom_call.1} parent=1 // loop_body
      %s22 = ssub.s32 %s17, 1
      %s23 = ssub.s32 %s17, 2
      %s30 = sadd.s32 1, %s25
      %p31 = scmp.ge.s32.totalorder %s30, 1
      %s32 = scalar_select %p31, 0, %s30
      %s33 = sadd.s32 1, %s24
      %s34 = scalar_select %p31, %s33, %s24
      %p35 = scmp.ge.s32.totalorder %s34, 2
      %s36 = scalar_select %p35, 0, %s34
      %s37 = ssub.s32 %s24, %s36
      %s38 = ssub.s32 %s25, %s32
      %s39 = sor.u32 %s37, %s38
      %p40 = scmp.eq.s32.totalorder %s39, 0
      %s42 = sadd.s32 %s41, 1
      %s43 = scalar_select %p40, %s41, %s42
      %p46 = pneg %p40
      %p47 = scmp.eq.s32.totalorder %s17, 1
      %p48 = por %p46, %p47
      %p49 = scmp.ne.s32.totalorder %s41, %s44
      %p50 = scmp.eq.s32.totalorder %s17, 0
      %p51 = por %p49, %p50
      %p52 = scmp.ne.s32.totalorder %s41, %s44
      %p53 = scmp.eq.s32.totalorder %s22, 1
      %p54 = por %p52, %p53
      %p55 = scmp.ne.s32.totalorder %s44, %s45
      %p56 = scmp.eq.s32.totalorder %s22, 0
      %p57 = por %p55, %p56
      %p58 = scmp.ne.s32.totalorder %s44, %s45
      %p59 = scmp.eq.s32.totalorder %s23, 1
      %p60 = por %p58, %p59
      %p62 = scmp.ne.s32.totalorder %s45, %s61
      %p63 = scmp.eq.s32.totalorder %s23, 0
      %p64 = por %p62, %p63
      %s65 = ssub.s32 %s24, %s36
      %s66 = ssub.s32 %s25, %s32
      %s67 = sor.u32 %s65, %s66
      %p68 = scmp.eq.s32.totalorder %s67, 0
      %s70 = sadd.s32 %s69, 1
      %s71 = scalar_select %p68, %s69, %s70
      %p74 = pneg %p68
      %p75 = scmp.eq.s32.totalorder %s17, 1
      %p76 = por %p74, %p75
      %p77 = scmp.ne.s32.totalorder %s69, %s72
      %p78 = scmp.eq.s32.totalorder %s17, 0
      %p79 = por %p77, %p78
      %p80 = scmp.ne.s32.totalorder %s69, %s72
      %p81 = scmp.eq.s32.totalorder %s22, 1
      %p82 = por %p80, %p81
      %p83 = scmp.ne.s32.totalorder %s72, %s73
      %p84 = scmp.eq.s32.totalorder %s22, 0
      %p85 = por %p83, %p84
      %p86 = scmp.ne.s32.totalorder %s72, %s73
      %p87 = scmp.eq.s32.totalorder %s23, 1
      %p88 = por %p86, %p87
      %p90 = scmp.ne.s32.totalorder %s73, %s89
      %p91 = scmp.eq.s32.totalorder %s23, 0
      %p92 = por %p90, %p91
      %s93 = ssub.s32 %s24, %s36
      %s94 = ssub.s32 %s25, %s32
      %s95 = sor.u32 %s93, %s94
      %p96 = scmp.eq.s32.totalorder %s95, 0
      %s98 = sadd.s32 %s97, 1
      %s99 = scalar_select %p96, %s97, %s98
      %p102 = pneg %p96
      %p103 = scmp.eq.s32.totalorder %s17, 1
      %p104 = por %p102, %p103
      %p105 = scmp.ne.s32.totalorder %s97, %s100
      %p106 = scmp.eq.s32.totalorder %s17, 0
      %p107 = por %p105, %p106
      %p108 = scmp.ne.s32.totalorder %s97, %s100
      %p109 = scmp.eq.s32.totalorder %s22, 1
      %p110 = por %p108, %p109
      %p111 = scmp.ne.s32.totalorder %s100, %s101
      %p112 = scmp.eq.s32.totalorder %s22, 0
      %p113 = por %p111, %p112
      %p114 = scmp.ne.s32.totalorder %s100, %s101
      %p115 = scmp.eq.s32.totalorder %s23, 1
      %p116 = por %p114, %p115
      %p118 = scmp.ne.s32.totalorder %s101, %s117
      %p119 = scmp.eq.s32.totalorder %s23, 0
      %p120 = por %p118, %p119
      %p121 = scmp.le.s32.totalorder 1, %s17
      %p122 = scmp.lt.s32.totalorder %s17, 3
      %p123 = pnand %p121, %p122
      %p124 = pneg %p123
      // Predicated region
      $region9: #{tpu_custom_call.1} parent=5 // pred_check
        _
      $region10: #{tpu_custom_call.1} parent=5 // pred_check_branch
        %126 = sbr.rel (%p123) target = $region12
      $region11: #{tpu_custom_call.1} parent=5 // pred_region
        %s127 = ssub.s32 %s17, 1
      $region12: #{tpu_custom_call.1} parent=5 // pred_fallthru
        _
      %p128 = scmp.lt.s32.totalorder %s17, 2
      // Predicated region
      $region13: #{tpu_custom_call.1} parent=5 // pred_check
        %p129 = pneg %p128
      $region14: #{tpu_custom_call.1} parent=5 // pred_check_branch
        %131 = sbr.rel (%p129) target = $region16
      $region15: #{tpu_custom_call.1} parent=5 // pred_region
        // Predicated region
        $region17: #{tpu_custom_call.1} parent=15 // pred_check
          %p132 = pneg %p51
        $region18: #{tpu_custom_call.1} parent=15 // pred_check_branch
          %134 = sbr.rel (%p132) target = $region20
        $region19: #{tpu_custom_call.1} parent=15 // pred_region
          %s135 = sand.u32 %s41, 1
          %s136 = scalar_lea.sflag [#allocation3], %s135
          %s137 = sand.u32 %s41, 1
          %s138 = smul.addr %s137, 32
          %s139 = scalar_lea.vmem [#allocation2], %s138
          %s141 = ssub.s32 512, 512
          %142 = vsyncadd %s136, %s141
          %s143 = smul.addr %s24, 4
          %s144 = sadd.s32 %s25, %s143
          %s145 = smul.addr %s144, 128
          %s146 = scalar_lea.hbm %s0, %s145
          %s147 = sshll.u32 %s139, 4
          %s148 = int_to_ptr.vmem [resolvable:$true] %s147
          %153 = dma.hbm_to_vmem [thread:$0]  %s146, 512, %s148, %s136, 128, 128, 8
        $region20: #{tpu_custom_call.1} parent=15 // pred_fallthru
          _
        // Predicated region
        $region21: #{tpu_custom_call.1} parent=15 // pred_check
          %p154 = pneg %p79
        $region22: #{tpu_custom_call.1} parent=15 // pred_check_branch
          %156 = sbr.rel (%p154) target = $region24
        $region23: #{tpu_custom_call.1} parent=15 // pred_region
          %s157 = sand.u32 %s69, 1
          %s158 = scalar_lea.sflag [#allocation6], %s157
          %s159 = sand.u32 %s69, 1
          %s160 = smul.addr %s159, 32
          %s161 = scalar_lea.vmem [#allocation5], %s160
          %s163 = ssub.s32 512, 512
          %164 = vsyncadd %s158, %s163
          %s165 = smul.addr %s24, 4
          %s166 = sadd.s32 %s25, %s165
          %s167 = smul.addr %s166, 128
          %s168 = scalar_lea.hbm %s1, %s167
          %s169 = sshll.u32 %s161, 4
          %s170 = int_to_ptr.vmem [resolvable:$true] %s169
          %175 = dma.hbm_to_vmem [thread:$0]  %s168, 512, %s170, %s158, 128, 128, 8
        $region24: #{tpu_custom_call.1} parent=15 // pred_fallthru
          _
      $region16: #{tpu_custom_call.1} parent=5 // pred_fallthru
        _
      %p176 = scmp.le.s32.totalorder 1, %s17
      %p177 = scmp.lt.s32.totalorder %s17, 3
      %p178 = pnand %p176, %p177
      %p179 = pneg %p178
      // Predicated region
      $region25: #{tpu_custom_call.1} parent=5 // pred_check
        _
      $region26: #{tpu_custom_call.1} parent=5 // pred_check_branch
        %181 = sbr.rel (%p178) target = $region28
      $region27: #{tpu_custom_call.1} parent=5 // pred_region
        %s182 = ssub.s32 %s17, 1
        %s183 = sand.u32 %s44, 1
        %s184 = scalar_lea.sflag [#allocation3], %s183
        %s185 = sand.u32 %s44, 1
        %s186 = smul.addr %s185, 32
        %s187 = scalar_lea.vmem [#allocation2], %s186
        // Predicated region
        $region29: #{tpu_custom_call.1} parent=27 // pred_check
          %p188 = pneg %p57
        $region30: #{tpu_custom_call.1} parent=27 // pred_check_branch
          %190 = sbr.rel (%p188) target = $region32
        $region31: #{tpu_custom_call.1} parent=27 // pred_region
          %191 = dma.done %s184, 512
        $region32: #{tpu_custom_call.1} parent=27 // pred_fallthru
          _
        %s192 = sand.u32 %s72, 1
        %s193 = scalar_lea.sflag [#allocation6], %s192
        %s194 = sand.u32 %s72, 1
        %s195 = smul.addr %s194, 32
        %s196 = scalar_lea.vmem [#allocation5], %s195
        // Predicated region
        $region33: #{tpu_custom_call.1} parent=27 // pred_check
          %p197 = pneg %p85
        $region34: #{tpu_custom_call.1} parent=27 // pred_check_branch
          %199 = sbr.rel (%p197) target = $region36
        $region35: #{tpu_custom_call.1} parent=27 // pred_region
          %200 = dma.done %s193, 512
        $region36: #{tpu_custom_call.1} parent=27 // pred_fallthru
          _
        %s201 = sand.u32 %s44, 1
        %s202 = scalar_lea.sflag [#allocation3], %s201
        %s203 = sand.u32 %s44, 1
        %s204 = smul.addr %s203, 32
        %s205 = scalar_lea.vmem [#allocation2], %s204
        %p206 = pneg %p57
        %p207 = pneg %p54
        %s208 = sand.u32 %s72, 1
        %s209 = scalar_lea.sflag [#allocation6], %s208
        %s210 = sand.u32 %s72, 1
        %s211 = smul.addr %s210, 32
        %s212 = scalar_lea.vmem [#allocation5], %s211
        %p213 = pneg %p85
        %p214 = pneg %p82
        %p215 = pneg %p113
        %p216 = pneg %p110
        %s217 = sand.u32 %s100, 1
        %s218 = scalar_lea.sflag [#allocation4], %s217
        %s219 = sand.u32 %s100, 1
        %s220 = smul.addr %s219, 8
        %s221 = scalar_lea.vmem [#allocation7], %s220
        %v222 = vld [vmem:[%s187] sm:$0xff]
        %v223 = vld [vmem:[%s196] sm:$0xff]
        %v224 = vmul.f32 %v222, %v223
        %v225 = vmul.f32 %v222, %v222
        %v226 = vmul.f32 %v223, %v223
        %s227 = scalar_lea.vmem %s187, 8 [#allocation2]
        %v228 = vld [vmem:[%s227] sm:$0xff]
        %s229 = scalar_lea.vmem %s196, 8 [#allocation5]
        %v230 = vld [vmem:[%s229] sm:$0xff]
        %v231 = vmul.f32 %v228, %v230
        %v232 = vadd.f32 %v224, %v231
        %v233 = vmul.f32 %v228, %v228
        %v234 = vadd.f32 %v225, %v233
        %v235 = vmul.f32 %v230, %v230
        %v236 = vadd.f32 %v226, %v235
        %v237 = vadd.f32 %v222, %v228
        %v238 = vadd.f32 %v223, %v230
        %s239 = scalar_lea.vmem %s187, 16 [#allocation2]
        %v240 = vld [vmem:[%s239] sm:$0xff]
        %s241 = scalar_lea.vmem %s196, 16 [#allocation5]
        %v242 = vld [vmem:[%s241] sm:$0xff]
        %v243 = vmul.f32 %v240, %v242
        %v244 = vadd.f32 %v232, %v243
        %v245 = vmul.f32 %v240, %v240
        %v246 = vadd.f32 %v234, %v245
        %v247 = vmul.f32 %v242, %v242
        %v248 = vadd.f32 %v236, %v247
        %v249 = vadd.f32 %v237, %v240
        %v250 = vadd.f32 %v238, %v242
        %s251 = scalar_lea.vmem %s187, 24 [#allocation2]
        %v252 = vld [vmem:[%s251] sm:$0xff]
        %s253 = scalar_lea.vmem %s196, 24 [#allocation5]
        %v254 = vld [vmem:[%s253] sm:$0xff]
        %v255 = vmul.f32 %v252, %v254
        %v256 = vadd.f32 %v244, %v255
        %v257 = vmul.f32 %v252, %v252
        %v258 = vadd.f32 %v246, %v257
        %v259 = vmul.f32 %v254, %v254
        %v260 = vadd.f32 %v248, %v259
        %v261 = vadd.f32 %v249, %v252
        %v262 = vadd.f32 %v250, %v254
        %v263 = vsub.f32 4.0, %v261
        %v264 = vsub.f32 %v263, %v262
        %v265 = vadd.f32 %v264, %v256
        %v266 = vmul.f32 %v261, 2.0
        %v267 = vsub.f32 4.0, %v266
        %v268 = vadd.f32 %v267, %v258
        %v269 = vmul.f32 %v262, 2.0
        %v270 = vsub.f32 4.0, %v269
        %v271 = vadd.f32 %v270, %v260
        %v272 = vmul.f32 %v258, %v260
        %v273 = vmax.f32 %v272, 1e-16
        %v274 = vrsqrt.pop %v273
        %v275 = vmul.f32 %v256, %v274
        %v276 = vmul.f32 %v268, %v271
        %v277 = vmax.f32 %v276, 1e-16
        %v278 = vrsqrt.pop %v277
        %v279 = vmul.f32 %v265, %v278
        %v280 = vmin.f32 %v275, %v279
        %v281 = vsub.f32 1.0, %v280
        %v282 = vadd.f32 %v281, 0.001
        %v283 = vlog2.pop %v282
        %v284 = vmul.f32 %v283, 0.6931472
        %v285 = vmul.f32 %v284, 0.4
        %v286 = vmul.f32 %v285, 1.442695
        %v287 = vpow.pop %v286
        %vm288 = vcmask 261120
        %v289 = vsel %vm288, %v287, 0.0
        %290 = vadd.xlane.f32.xlu0 %v289
        %v291 = vpop.xlane.xlu0 %290
        %v292 = vrot.slane %v291, 4
        %v293 = vadd.f32 %v291, %v292
        %v294 = vrot.slane %v293, 2
        %v295 = vadd.f32 %v293, %v294
        %v296 = vrot.slane %v295, 1
        %v297 = vadd.f32 %v295, %v296
        %s298 = vtos %v297
        %v299 = vstv %s298
        %300 = vst [vmem:[%s221] sm:$0xff] %v299
        %s301 = sand.u32 %s100, 1
        %s302 = scalar_lea.sflag [#allocation4], %s301
        %s303 = sand.u32 %s100, 1
        %s304 = smul.addr %s303, 8
        %s305 = scalar_lea.vmem [#allocation7], %s304
        // Predicated region
        $region37: #{tpu_custom_call.1} parent=27 // pred_check
          %p306 = pneg %p110
        $region38: #{tpu_custom_call.1} parent=27 // pred_check_branch
          %308 = sbr.rel (%p306) target = $region40
        $region39: #{tpu_custom_call.1} parent=27 // pred_region
          %s310 = ssub.s32 128, 128
          %311 = vsyncadd %s302, %s310
          %s312 = sadd.s32 %s27, %s26
          %s313 = smul.addr %s312, 128
          %s314 = scalar_lea.hbm %s2, %s313
          %s316 = sshll.u32 %s305, 4
          %s317 = int_to_ptr.vmem [resolvable:$true] %s316
          %319 = dma.vmem_to_hbm [thread:$0]  %s317, 128, %s314, %s302
        $region40: #{tpu_custom_call.1} parent=27 // pred_fallthru
          _
      $region28: #{tpu_custom_call.1} parent=5 // pred_fallthru
        _
      %p320 = scmp.le.s32.totalorder 2, %s17
      // Predicated region
      $region41: #{tpu_custom_call.1} parent=5 // pred_check
        %p321 = pneg %p320
      $region42: #{tpu_custom_call.1} parent=5 // pred_check_branch
        %323 = sbr.rel (%p321) target = $region44
      $region43: #{tpu_custom_call.1} parent=5 // pred_region
        %s324 = ssub.s32 %s17, 2
        // Predicated region
        $region45: #{tpu_custom_call.1} parent=43 // pred_check
          %p325 = pneg %p116
        $region46: #{tpu_custom_call.1} parent=43 // pred_check_branch
          %327 = sbr.rel (%p325) target = $region48
        $region47: #{tpu_custom_call.1} parent=43 // pred_region
          %s328 = sand.u32 %s101, 1
          %s329 = scalar_lea.sflag [#allocation4], %s328
          %s330 = sand.u32 %s101, 1
          %s331 = smul.addr %s330, 8
          %s332 = scalar_lea.vmem [#allocation7], %s331
          %333 = dma.done %s329, 128
        $region48: #{tpu_custom_call.1} parent=43 // pred_fallthru
          _
      $region44: #{tpu_custom_call.1} parent=5 // pred_fallthru
        _
    $region6: #{tpu_custom_call.1} parent=1 // loop_footer
      %s21 = sadd.s32 1, %s17
    $region7: #{tpu_custom_call.1} parent=1 // loop_footer_branch
      %16 = sbr.rel target = $region3
    $region8: #{tpu_custom_call.1} parent=1 // loop_exit
      _
    %334 = vsyncpa [#allocation3], 1
    %s335 = scalar_lea.sflag [#allocation3], 1
    %336 = vsyncpa %s335, 1
    %337 = vsyncpa [#allocation6], 1
    %s338 = scalar_lea.sflag [#allocation6], 1
    %339 = vsyncpa %s338, 1
    %340 = vsyncpa [#allocation4], 1
    %s341 = scalar_lea.sflag [#allocation4], 1
    %342 = vsyncpa %s341, 1

</llo_original>
